<compile_context>
chip_gen: v7x
topology: tpu7x:2x2x1
jax: 0.10.0
libtpu: 0.0.40
codegen_flags: <defaults>
</compile_context>

<pallas_src>
import math
import jax
import jax.numpy as jnp
from jax.experimental import pallas as pl
from jax.experimental.pallas import tpu as pltpu


def _additive_attn_kernel(q_ref, k_ref, v_ref, wq_ref, wk_ref, b_ref,
                          ws_ref, bs_ref, ctx_ref, attn_ref):
    tb, T, H = q_ref.shape

    # ---- projections on the MXU, f32 accumulation, native operand dtype.
    q2 = q_ref[...].reshape(tb * T, H)
    k2 = k_ref[...].reshape(tb * T, H)
    hq = jnp.dot(q2, wq_ref[...], preferred_element_type=jnp.float32)
    hk = jnp.dot(k2, wk_ref[...], preferred_element_type=jnp.float32)

    # ---- tanh(key_proj + query_proj + bias)  (EUP transcendental)
    h = jnp.tanh(hq + hk + b_ref[...])                     # (tb*T, H), f32
    h3 = h.reshape(tb, T, H)

    # ---- score = h @ w_score^T + b_score   (lane reduction over H)
    score = jnp.sum(h3 * ws_ref[...][None], axis=-1) + bs_ref[...]   # (tb, T)

    # ---- numerically-stable softmax over the sequence axis
    m = jnp.max(score, axis=-1, keepdims=True)
    e = jnp.exp(score - m)
    attn = e / jnp.sum(e, axis=-1, keepdims=True)          # (tb, T), f32

    # ---- context = attn @ value   (weighted sum over T)
    ctx = jnp.sum(attn[:, :, None] * v_ref[...].astype(jnp.float32), axis=1)  # (tb, H)

    ctx_ref[...] = ctx.astype(ctx_ref.dtype)
    attn_ref[...] = attn.astype(attn_ref.dtype)


def additive_attention_pallas(query, key, value, wq, wk, bias, w_score, b_score,
                              *, tb=8):
    """query/key/value: (B, T, H); wq/wk: (H, H) (PyTorch layout, out x in);
    bias: (H,); w_score: (1, H); b_score: (1,).
    Returns (context (B, 1, H), attn (B, T)) matching the PyTorch module."""
    B, T, H = query.shape
    out_dtype = query.dtype

    tb = min(tb, B)
    n_blk = (B + tb - 1) // tb
    B_pad = n_blk * tb
    if B_pad != B:
        pad = ((0, B_pad - B), (0, 0), (0, 0))
        query = jnp.pad(query, pad)
        key = jnp.pad(key, pad)
        value = jnp.pad(value, pad)

    # Wrapper-side layout/cast prep (done once, not per grid step).
    wq_t = wq.T                                   # (H_in, H_out)
    wk_t = wk.T
    bias_r = bias.astype(jnp.float32).reshape(1, H)
    ws_r = w_score.astype(jnp.float32).reshape(1, H)
    bs_r = b_score.astype(jnp.float32).reshape(1, 1)

    itemsize = jnp.dtype(query.dtype).itemsize
    flops = 4 * B_pad * T * H * H + 4 * B_pad * T * H
    transcendentals = B_pad * T * H + B_pad * T
    bytes_accessed = (
        3 * B_pad * T * H * itemsize
        + (wq_t.size + wk_t.size) * jnp.dtype(wq_t.dtype).itemsize
        + (bias_r.size + ws_r.size + bs_r.size) * 4
        + (B_pad * H + B_pad * T) * jnp.dtype(out_dtype).itemsize)

    ctx, attn = pl.pallas_call(
        _additive_attn_kernel,
        out_shape=(jax.ShapeDtypeStruct((B_pad, H), out_dtype),
                   jax.ShapeDtypeStruct((B_pad, T), out_dtype)),
        grid_spec=pltpu.PrefetchScalarGridSpec(
            num_scalar_prefetch=0,
            grid=(n_blk,),
            in_specs=[
                pl.BlockSpec((tb, T, H), lambda i: (i, 0, 0)),   # query tile
                pl.BlockSpec((tb, T, H), lambda i: (i, 0, 0)),   # key tile
                pl.BlockSpec((tb, T, H), lambda i: (i, 0, 0)),   # value tile
                pl.BlockSpec((H, H), lambda i: (0, 0)),          # Wq^T (resident)
                pl.BlockSpec((H, H), lambda i: (0, 0)),          # Wk^T (resident)
                pl.BlockSpec((1, H), lambda i: (0, 0)),          # additive bias
                pl.BlockSpec((1, H), lambda i: (0, 0)),          # score weight row
                pl.BlockSpec((1, 1), lambda i: (0, 0)),          # score bias
            ],
            out_specs=[
                pl.BlockSpec((tb, H), lambda i: (i, 0)),          # context
                pl.BlockSpec((tb, T), lambda i: (i, 0)),          # attn
            ],
        ),
        compiler_params=pltpu.CompilerParams(
            dimension_semantics=("parallel",)),
        cost_estimate=pl.CostEstimate(
            flops=flops,
            transcendentals=transcendentals,
            bytes_accessed=bytes_accessed),
    )(query, key, value, wq_t, wk_t, bias_r, ws_r, bs_r)

    context = ctx[:B].reshape(B, 1, H)
    return context, attn[:B]


def _torch_linear_init(rng, out_features, in_features, with_bias=True):
    """Deterministic init matching nn.Linear's kaiming-uniform scheme."""
    kw, kb = jax.random.split(rng)
    bound = 1.0 / math.sqrt(in_features)
    w = jax.random.uniform(kw, (out_features, in_features),
                           minval=-bound, maxval=bound, dtype=jnp.float32)
    if not with_bias:
        return w, None
    b = jax.random.uniform(kb, (out_features,),
                           minval=-bound, maxval=bound, dtype=jnp.float32)
    return w, b


def additive_attention_reference(query, key, value, wq, wk, bias, w_score, b_score):
    h = jnp.tanh(jnp.einsum("bth,dh->btd", key, wk)
                 + jnp.einsum("bth,dh->btd", query, wq)
                 + bias)
    score = jnp.einsum("bth,oh->bto", h, w_score)[..., 0] + b_score[0]
    attn = jax.nn.softmax(score, axis=-1)
    context = jnp.einsum("bt,bth->bh", attn, value)[:, None, :]
    return context, attn


if __name__ == "__main__":
    B, T, H = 4, 16, 128    # small, but lane-dense H and sublane-aligned T

    root = jax.random.PRNGKey(0)
    kq, kk, kv, k1, k2, kb, k3 = jax.random.split(root, 7)

    query = jax.random.normal(kq, (B, T, H), dtype=jnp.float32)
    key_ = jax.random.normal(kk, (B, T, H), dtype=jnp.float32)
    value = jax.random.normal(kv, (B, T, H), dtype=jnp.float32)

    wq, _ = _torch_linear_init(k1, H, H, with_bias=False)       # query_proj (no bias)
    wk, _ = _torch_linear_init(k2, H, H, with_bias=False)       # key_proj (no bias)
    bias = jax.random.uniform(kb, (H,), minval=-0.1, maxval=0.1,
                              dtype=jnp.float32)                 # additive bias param
    w_score, b_score = _torch_linear_init(k3, 1, H)              # score_proj

    ctx, attn = additive_attention_pallas(query, key_, value,
                                          wq, wk, bias, w_score, b_score)
    ctx = jax.block_until_ready(ctx)
    attn = jax.block_until_ready(attn)

    ctx_ref, attn_ref = additive_attention_reference(query, key_, value,
                                                     wq, wk, bias, w_score, b_score)

    assert ctx.shape == (B, 1, H) and attn.shape == (B, T)
    assert jnp.allclose(attn, attn_ref, atol=2e-5, rtol=2e-5), "attn mismatch vs reference"
    assert jnp.allclose(ctx, ctx_ref, atol=2e-5, rtol=2e-5), "context mismatch vs reference"

    print("KERNEL_OK")
</pallas_src>

<mosaic_0001>
module attributes {stable_mosaic.version = 11 : i64} {
  func.func @_additive_attn_kernel(%arg0: i32, %arg1: memref<4x16x128xf32, #tpu.memory_space<vmem>>, %arg2: memref<4x16x128xf32, #tpu.memory_space<vmem>>, %arg3: memref<4x16x128xf32, #tpu.memory_space<vmem>>, %arg4: memref<128x128xf32, #tpu.memory_space<vmem>>, %arg5: memref<128x128xf32, #tpu.memory_space<vmem>>, %arg6: memref<1x128xf32, #tpu.memory_space<vmem>>, %arg7: memref<1x128xf32, #tpu.memory_space<vmem>>, %arg8: memref<1x1xf32, #tpu.memory_space<vmem>>, %arg9: memref<4x128xf32, #tpu.memory_space<vmem>>, %arg10: memref<4x16xf32, #tpu.memory_space<vmem>>) attributes {dimension_semantics = [#tpu.dimension_semantics<parallel>], iteration_bounds = array<i64: 1>, scalar_prefetch = 0 : i64, scratch_operands = 0 : i64, tpu.core_type = #tpu.core_type<tc>, window_params = [{transform_indices = @transform_0, window_bounds = array<i64: 4, 16, 128>}, {transform_indices = @transform_1, window_bounds = array<i64: 4, 16, 128>}, {transform_indices = @transform_2, window_bounds = array<i64: 4, 16, 128>}, {pipeline_mode = #tpu.pipeline_mode<synchronous>, transform_indices = @transform_3, window_bounds = array<i64: 128, 128>}, {pipeline_mode = #tpu.pipeline_mode<synchronous>, transform_indices = @transform_4, window_bounds = array<i64: 128, 128>}, {pipeline_mode = #tpu.pipeline_mode<synchronous>, transform_indices = @transform_5, window_bounds = array<i64: 1, 128>}, {pipeline_mode = #tpu.pipeline_mode<synchronous>, transform_indices = @transform_6, window_bounds = array<i64: 1, 128>}, {pipeline_mode = #tpu.pipeline_mode<synchronous>, transform_indices = @transform_7, window_bounds = array<i64: 1, 1>}, {transform_indices = @transform_8, window_bounds = array<i64: 4, 128>}, {transform_indices = @transform_9, window_bounds = array<i64: 4, 16>}]} {
    %c0 = arith.constant 0 : index
    %c0_0 = arith.constant 0 : index
    %c0_1 = arith.constant 0 : index
    %0 = vector.load %arg1[%c0, %c0_0, %c0_1] : memref<4x16x128xf32, #tpu.memory_space<vmem>>, vector<4x16x128xf32>
    %1 = vector.shape_cast %0 : vector<4x16x128xf32> to vector<64x128xf32>
    %c0_2 = arith.constant 0 : index
    %c0_3 = arith.constant 0 : index
    %c0_4 = arith.constant 0 : index
    %2 = vector.load %arg2[%c0_2, %c0_3, %c0_4] : memref<4x16x128xf32, #tpu.memory_space<vmem>>, vector<4x16x128xf32>
    %3 = vector.shape_cast %2 : vector<4x16x128xf32> to vector<64x128xf32>
    %c0_5 = arith.constant 0 : index
    %c0_6 = arith.constant 0 : index
    %4 = vector.load %arg4[%c0_5, %c0_6] : memref<128x128xf32, #tpu.memory_space<vmem>>, vector<128x128xf32>
    %cst = arith.constant dense<0.000000e+00> : vector<64x128xf32>
    %5 = tpu.matmul %1, %4, %cst {dimension_numbers = #tpu.dot_dimension_numbers<[1], [0], [0], [1], [0, 0, 1, 1], [], []>} : vector<64x128xf32>, vector<128x128xf32>, vector<64x128xf32> -> vector<64x128xf32>
    %c0_7 = arith.constant 0 : index
    %c0_8 = arith.constant 0 : index
    %6 = vector.load %arg5[%c0_7, %c0_8] : memref<128x128xf32, #tpu.memory_space<vmem>>, vector<128x128xf32>
    %cst_9 = arith.constant dense<0.000000e+00> : vector<64x128xf32>
    %7 = tpu.matmul %3, %6, %cst_9 {dimension_numbers = #tpu.dot_dimension_numbers<[1], [0], [0], [1], [0, 0, 1, 1], [], []>} : vector<64x128xf32>, vector<128x128xf32>, vector<64x128xf32> -> vector<64x128xf32>
    %8 = arith.addf %5, %7 : vector<64x128xf32>
    %c0_10 = arith.constant 0 : index
    %c0_11 = arith.constant 0 : index
    %9 = vector.load %arg6[%c0_10, %c0_11] : memref<1x128xf32, #tpu.memory_space<vmem>>, vector<1x128xf32>
    %10 = vector.broadcast %9 : vector<1x128xf32> to vector<64x128xf32>
    %11 = arith.addf %8, %10 : vector<64x128xf32>
    %12 = math.tanh %11 : vector<64x128xf32>
    %13 = vector.shape_cast %12 : vector<64x128xf32> to vector<4x16x128xf32>
    %c0_12 = arith.constant 0 : index
    %c0_13 = arith.constant 0 : index
    %14 = vector.load %arg7[%c0_12, %c0_13] : memref<1x128xf32, #tpu.memory_space<vmem>>, vector<1x128xf32>
    %15 = vector.shape_cast %14 : vector<1x128xf32> to vector<1x1x128xf32>
    %16 = vector.broadcast %15 : vector<1x1x128xf32> to vector<4x16x128xf32>
    %17 = arith.mulf %13, %16 : vector<4x16x128xf32>
    %cst_14 = arith.constant dense<0.000000e+00> : vector<4x16xf32>
    %18 = vector.multi_reduction <add>, %17, %cst_14 [2] : vector<4x16x128xf32> to vector<4x16xf32>
    %c0_15 = arith.constant 0 : index
    %c0_16 = arith.constant 0 : index
    %19 = vector.load %arg8[%c0_15, %c0_16] : memref<1x1xf32, #tpu.memory_space<vmem>>, vector<1x1xf32>
    %20 = vector.broadcast %19 : vector<1x1xf32> to vector<4x16xf32>
    %21 = arith.addf %18, %20 : vector<4x16xf32>
    %cst_17 = arith.constant dense<0xFF800000> : vector<4xf32>
    %22 = vector.multi_reduction <maximumf>, %21, %cst_17 [1] : vector<4x16xf32> to vector<4xf32>
    %23 = vector.shape_cast %22 : vector<4xf32> to vector<4x1xf32>
    %24 = vector.broadcast %23 : vector<4x1xf32> to vector<4x16xf32>
    %25 = arith.subf %21, %24 : vector<4x16xf32>
    %26 = math.exp %25 : vector<4x16xf32>
    %cst_18 = arith.constant dense<0.000000e+00> : vector<4xf32>
    %27 = vector.multi_reduction <add>, %26, %cst_18 [1] : vector<4x16xf32> to vector<4xf32>
    %28 = vector.shape_cast %27 : vector<4xf32> to vector<4x1xf32>
    %29 = vector.broadcast %28 : vector<4x1xf32> to vector<4x16xf32>
    %30 = arith.divf %26, %29 : vector<4x16xf32>
    %31 = vector.shape_cast %30 : vector<4x16xf32> to vector<4x16x1xf32>
    %c0_19 = arith.constant 0 : index
    %c0_20 = arith.constant 0 : index
    %c0_21 = arith.constant 0 : index
    %32 = vector.load %arg3[%c0_19, %c0_20, %c0_21] : memref<4x16x128xf32, #tpu.memory_space<vmem>>, vector<4x16x128xf32>
    %33 = vector.broadcast %31 : vector<4x16x1xf32> to vector<4x16x128xf32>
    %34 = arith.mulf %33, %32 : vector<4x16x128xf32>
    %cst_22 = arith.constant dense<0.000000e+00> : vector<4x128xf32>
    %35 = vector.multi_reduction <add>, %34, %cst_22 [1] : vector<4x16x128xf32> to vector<4x128xf32>
    %c0_23 = arith.constant 0 : index
    %c0_24 = arith.constant 0 : index
    %36 = vector.load %arg9[%c0_23, %c0_24] : memref<4x128xf32, #tpu.memory_space<vmem>>, vector<4x128xf32>
    tpu.vector_store %arg9[%c0_23, %c0_24], %35 {strides = array<i32>} : memref<4x128xf32, #tpu.memory_space<vmem>>, vector<4x128xf32>,
    %c0_25 = arith.constant 0 : index
    %c0_26 = arith.constant 0 : index
    %37 = vector.load %arg10[%c0_25, %c0_26] : memref<4x16xf32, #tpu.memory_space<vmem>>, vector<4x16xf32>
    tpu.vector_store %arg10[%c0_25, %c0_26], %30 {strides = array<i32>} : memref<4x16xf32, #tpu.memory_space<vmem>>, vector<4x16xf32>,
    return
  }
  func.func @transform_0(%arg0: i32) -> (i32, i32, i32) {
    %c0_i32 = arith.constant 0 : i32
    %c0_i32_0 = arith.constant 0 : i32
    %c0_i32_1 = arith.constant 0 : i32
    return %arg0, %c0_i32, %c0_i32_0 : i32, i32, i32
  }
  func.func @transform_1(%arg0: i32) -> (i32, i32, i32) {
    %c0_i32 = arith.constant 0 : i32
    %c0_i32_0 = arith.constant 0 : i32
    %c0_i32_1 = arith.constant 0 : i32
    return %arg0, %c0_i32, %c0_i32_0 : i32, i32, i32
  }
  func.func @transform_2(%arg0: i32) -> (i32, i32, i32) {
    %c0_i32 = arith.constant 0 : i32
    %c0_i32_0 = arith.constant 0 : i32
    %c0_i32_1 = arith.constant 0 : i32
    return %arg0, %c0_i32, %c0_i32_0 : i32, i32, i32
  }
  func.func @transform_3(%arg0: i32) -> (i32, i32) {
    %c0_i32 = arith.constant 0 : i32
    %c0_i32_0 = arith.constant 0 : i32
    %c0_i32_1 = arith.constant 0 : i32
    return %c0_i32, %c0_i32_0 : i32, i32
  }
  func.func @transform_4(%arg0: i32) -> (i32, i32) {
    %c0_i32 = arith.constant 0 : i32
    %c0_i32_0 = arith.constant 0 : i32
    %c0_i32_1 = arith.constant 0 : i32
    return %c0_i32, %c0_i32_0 : i32, i32
  }
  func.func @transform_5(%arg0: i32) -> (i32, i32) {
    %c0_i32 = arith.constant 0 : i32
    %c0_i32_0 = arith.constant 0 : i32
    %c0_i32_1 = arith.constant 0 : i32
    return %c0_i32, %c0_i32_0 : i32, i32
  }
  func.func @transform_6(%arg0: i32) -> (i32, i32) {
    %c0_i32 = arith.constant 0 : i32
    %c0_i32_0 = arith.constant 0 : i32
    %c0_i32_1 = arith.constant 0 : i32
    return %c0_i32, %c0_i32_0 : i32, i32
  }
  func.func @transform_7(%arg0: i32) -> (i32, i32) {
    %c0_i32 = arith.constant 0 : i32
    %c0_i32_0 = arith.constant 0 : i32
    %c0_i32_1 = arith.constant 0 : i32
    return %c0_i32, %c0_i32_0 : i32, i32
  }
  func.func @transform_8(%arg0: i32) -> (i32, i32) {
    %c0_i32 = arith.constant 0 : i32
    %c0_i32_0 = arith.constant 0 : i32
    return %arg0, %c0_i32 : i32, i32
  }
  func.func @transform_9(%arg0: i32) -> (i32, i32) {
    %c0_i32 = arith.constant 0 : i32
    %c0_i32_0 = arith.constant 0 : i32
    return %arg0, %c0_i32 : i32, i32
  }
}

</mosaic_0001>

<llo_original>
// kernel: tpu_custom_call.1
$region0: #{tpu_custom_call.1}
  #allocation0 [shape = 'u32[]', space=smem, size = 0x4, offset = 0x4, fixed_abs, tag = 'smem constant byte address 0x4 - core index']
  #allocation1 [shape = 'u32[144,128]{1,0:T(1,128)}', space=vmem, size = 0x12000, scoped, tag = 'internal scratch']
  #allocation2 [shape = 'f32[1,1]{1,0:T(1,128)S(1)}', space=vmem, size = 0x200, scoped, tag = 'scoped memory for tpu_custom_call.1']
  %s0 = inlined_call_operand.hbm [shape: f32[4,16,128], index: 0, kind: input, shape index: {}]
  %s1 = inlined_call_operand.hbm [shape: f32[4,16,128], index: 1, kind: input, shape index: {}]
  %s2 = inlined_call_operand.hbm [shape: f32[4,16,128], index: 2, kind: input, shape index: {}]
  %s3 = inlined_call_operand.hbm [shape: f32[128,128], index: 3, kind: input, shape index: {}]
  %s4 = inlined_call_operand.hbm [shape: f32[128,128], index: 4, kind: input, shape index: {}]
  %s5 = inlined_call_operand.vmem [shape: f32[1,128], index: 5, kind: input, shape index: {}]
  %s6 = inlined_call_operand.vmem [shape: f32[1,128], index: 6, kind: input, shape index: {}]
  %s7 = inlined_call_operand.<no memory space> [shape: f32[1,1], index: 7, kind: input, shape index: {}]
  %s8 = inlined_call_operand.hbm [shape: f32[4,128], index: 8, kind: output, shape index: {0}]
  %s9 = inlined_call_operand.hbm [shape: f32[4,16], index: 9, kind: output, shape index: {1}]
  %10 = xla_tuple %s8, %s9
  %s11 = sld [smem:[#allocation0]]
  $region70: #{tpu_custom_call.1} parent=0
    _
  %s13 = ssub.s32 1, %s11
  %s14 = scalar_select 0, %s13, %s11
  %v15 = vstv %s7
  %16 = vst [vmem:[#allocation2] sm:$0x1] %v15
  $region1: #{tpu_custom_call.1} parent=0
    #allocation3 [shape = 'u8[32768]{0}', space=vmem, size = 0x8000, scoped, tag = 'input window, operand 0, single buffered']
    #allocation4 [shape = 's32[1]{0}', space=sflag, size = 0x4, scoped, tag = 'scoped memory for tpu_custom_call.1']
    #allocation5 [shape = 's32[1]{0}', space=sflag, size = 0x4, scoped, tag = 'scoped memory for tpu_custom_call.1']
    #allocation6 [shape = 'u8[32768]{0}', space=vmem, size = 0x8000, scoped, tag = 'input window, operand 1, single buffered']
    #allocation7 [shape = 's32[1]{0}', space=sflag, size = 0x4, scoped, tag = 'scoped memory for tpu_custom_call.1']
    #allocation8 [shape = 'u8[32768]{0}', space=vmem, size = 0x8000, scoped, tag = 'input window, operand 2, single buffered']
    #allocation9 [shape = 'u8[65536]{0}', space=vmem, size = 0x10000, scoped, tag = 'input window, operand 3, single buffered']
    #allocation10 [shape = 's32[1]{0}', space=sflag, size = 0x4, scoped, tag = 'scoped memory for tpu_custom_call.1']
    #allocation11 [shape = 'u8[65536]{0}', space=vmem, size = 0x10000, scoped, tag = 'input window, operand 4, single buffered']
    #allocation12 [shape = 'u8[2048]{0}', space=vmem, size = 0x800, scoped, tag = 'output window, operand 0, single buffered']
    #allocation13 [shape = 'u8[2048]{0}', space=vmem, size = 0x800, scoped, tag = 'output window, operand 1, single buffered']
    #allocation14 [shape = 's32[1]{0}', space=sflag, size = 0x4, scoped, tag = 'scoped memory for tpu_custom_call.1']
    %17 = vsyncpa [#allocation4], 0
    %18 = vsyncpa [#allocation7], 0
    %19 = vsyncpa [#allocation10], 0
    %20 = vsyncpa [#allocation5], 0
    %21 = vsyncpa [#allocation14], 0
    // Predicated region
    $region2: #{tpu_custom_call.1} parent=1 // pred_check
      _
    $region3: #{tpu_custom_call.1} parent=1 // pred_check_branch
      %23 = sbr.rel (0) target = $region5
    $region4: #{tpu_custom_call.1} parent=1 // pred_region
      %s25 = ssub.s32 1024, 1024
      %26 = vsyncadd [#allocation4], %s25
      %s27 = sshll.u32 [#allocation3], 4
      %s28 = int_to_ptr.vmem [resolvable:$true] %s27
      %33 = dma.hbm_to_vmem [thread:$0]  %s0, 1024, %s28, [#allocation4], 128, 128, 8
    $region5: #{tpu_custom_call.1} parent=1 // pred_fallthru
      _
    // Predicated region
    $region6: #{tpu_custom_call.1} parent=1 // pred_check
      _
    $region7: #{tpu_custom_call.1} parent=1 // pred_check_branch
      %35 = sbr.rel (0) target = $region9
    $region8: #{tpu_custom_call.1} parent=1 // pred_region
      %s37 = ssub.s32 1024, 1024
      %38 = vsyncadd [#allocation7], %s37
      %s39 = sshll.u32 [#allocation6], 4
      %s40 = int_to_ptr.vmem [resolvable:$true] %s39
      %45 = dma.hbm_to_vmem [thread:$0]  %s1, 1024, %s40, [#allocation7], 128, 128, 8
    $region9: #{tpu_custom_call.1} parent=1 // pred_fallthru
      _
    // Predicated region
    $region10: #{tpu_custom_call.1} parent=1 // pred_check
      _
    $region11: #{tpu_custom_call.1} parent=1 // pred_check_branch
      %47 = sbr.rel (0) target = $region13
    $region12: #{tpu_custom_call.1} parent=1 // pred_region
      %s49 = ssub.s32 1024, 1024
      %50 = vsyncadd [#allocation7], %s49
      %s51 = sshll.u32 [#allocation8], 4
      %s52 = int_to_ptr.vmem [resolvable:$true] %s51
      %57 = dma.hbm_to_vmem [thread:$0]  %s2, 1024, %s52, [#allocation7], 128, 128, 8
    $region13: #{tpu_custom_call.1} parent=1 // pred_fallthru
      _
    // Predicated region
    $region14: #{tpu_custom_call.1} parent=1 // pred_check
      _
    $region15: #{tpu_custom_call.1} parent=1 // pred_check_branch
      %59 = sbr.rel (0) target = $region17
    $region16: #{tpu_custom_call.1} parent=1 // pred_region
      %s61 = ssub.s32 2048, 2048
      %62 = vsyncadd [#allocation10], %s61
      %s63 = sshll.u32 [#allocation9], 4
      %s64 = int_to_ptr.vmem [resolvable:$true] %s63
      %69 = dma.hbm_to_vmem [thread:$0]  %s3, 2048, %s64, [#allocation10], 128, 128, 8
    $region17: #{tpu_custom_call.1} parent=1 // pred_fallthru
      _
    // Predicated region
    $region18: #{tpu_custom_call.1} parent=1 // pred_check
      _
    $region19: #{tpu_custom_call.1} parent=1 // pred_check_branch
      %71 = sbr.rel (0) target = $region21
    $region20: #{tpu_custom_call.1} parent=1 // pred_region
      %s73 = ssub.s32 2048, 2048
      %74 = vsyncadd [#allocation10], %s73
      %s75 = sshll.u32 [#allocation11], 4
      %s76 = int_to_ptr.vmem [resolvable:$true] %s75
      %81 = dma.hbm_to_vmem [thread:$0]  %s4, 2048, %s76, [#allocation10], 128, 128, 8
    $region21: #{tpu_custom_call.1} parent=1 // pred_fallthru
      _
    // Predicated region
    $region22: #{tpu_custom_call.1} parent=1 // pred_check
      _
    $region23: #{tpu_custom_call.1} parent=1 // pred_check_branch
      %83 = sbr.rel (0) target = $region25
    $region24: #{tpu_custom_call.1} parent=1 // pred_region
      _
    $region25: #{tpu_custom_call.1} parent=1 // pred_fallthru
      _
    // Predicated region
    $region26: #{tpu_custom_call.1} parent=1 // pred_check
      _
    $region27: #{tpu_custom_call.1} parent=1 // pred_check_branch
      %85 = sbr.rel (0) target = $region29
    $region28: #{tpu_custom_call.1} parent=1 // pred_region
      _
    $region29: #{tpu_custom_call.1} parent=1 // pred_fallthru
      _
    // Predicated region
    $region30: #{tpu_custom_call.1} parent=1 // pred_check
      _
    $region31: #{tpu_custom_call.1} parent=1 // pred_check_branch
      %87 = sbr.rel (0) target = $region33
    $region32: #{tpu_custom_call.1} parent=1 // pred_region
      _
    $region33: #{tpu_custom_call.1} parent=1 // pred_fallthru
      _
    // Predicated region
    $region34: #{tpu_custom_call.1} parent=1 // pred_check
      _
    $region35: #{tpu_custom_call.1} parent=1 // pred_check_branch
      %89 = sbr.rel (0) target = $region37
    $region36: #{tpu_custom_call.1} parent=1 // pred_region
      %90 = dma.done [#allocation4], 1024
    $region37: #{tpu_custom_call.1} parent=1 // pred_fallthru
      _
    // Predicated region
    $region38: #{tpu_custom_call.1} parent=1 // pred_check
      _
    $region39: #{tpu_custom_call.1} parent=1 // pred_check_branch
      %92 = sbr.rel (0) target = $region41
    $region40: #{tpu_custom_call.1} parent=1 // pred_region
      %93 = dma.done [#allocation7], 1024
    $region41: #{tpu_custom_call.1} parent=1 // pred_fallthru
      _
    // Predicated region
    $region42: #{tpu_custom_call.1} parent=1 // pred_check
      _
    $region43: #{tpu_custom_call.1} parent=1 // pred_check_branch
      %95 = sbr.rel (0) target = $region45
    $region44: #{tpu_custom_call.1} parent=1 // pred_region
      %96 = dma.done [#allocation7], 1024
    $region45: #{tpu_custom_call.1} parent=1 // pred_fallthru
      _
    // Predicated region
    $region46: #{tpu_custom_call.1} parent=1 // pred_check
      _
    $region47: #{tpu_custom_call.1} parent=1 // pred_check_branch
      %98 = sbr.rel (0) target = $region49
    $region48: #{tpu_custom_call.1} parent=1 // pred_region
      %99 = dma.done [#allocation10], 2048
    $region49: #{tpu_custom_call.1} parent=1 // pred_fallthru
      _
    // Predicated region
    $region50: #{tpu_custom_call.1} parent=1 // pred_check
      _
    $region51: #{tpu_custom_call.1} parent=1 // pred_check_branch
      %101 = sbr.rel (0) target = $region53
    $region52: #{tpu_custom_call.1} parent=1 // pred_region
      %102 = dma.done [#allocation10], 2048
    $region53: #{tpu_custom_call.1} parent=1 // pred_fallthru
      _
    %v103 = vld [vmem:[#allocation3] sm:$0xff]
    %v104 = vld [vmem:[#allocation3 + $0x8] sm:$0xff]
    %v105 = vld [vmem:[#allocation3 + $0x10] sm:$0xff]
    %v106 = vld [vmem:[#allocation3 + $0x18] sm:$0xff]
    %v107 = vld [vmem:[#allocation3 + $0x20] sm:$0xff]
    %v108 = vld [vmem:[#allocation3 + $0x28] sm:$0xff]
    %v109 = vld [vmem:[#allocation3 + $0x30] sm:$0xff]
    %v110 = vld [vmem:[#allocation3 + $0x38] sm:$0xff]
    %v111 = vld [vmem:[#allocation6] sm:$0xff]
    %v112 = vld [vmem:[#allocation6 + $0x8] sm:$0xff]
    %v113 = vld [vmem:[#allocation6 + $0x10] sm:$0xff]
    %v114 = vld [vmem:[#allocation6 + $0x18] sm:$0xff]
    %v115 = vld [vmem:[#allocation6 + $0x20] sm:$0xff]
    %v116 = vld [vmem:[#allocation6 + $0x28] sm:$0xff]
    %v117 = vld [vmem:[#allocation6 + $0x30] sm:$0xff]
    %v118 = vld [vmem:[#allocation6 + $0x38] sm:$0xff]
    %v119 = vld [vmem:[#allocation9] sm:$0xff]
    %v120 = vld [vmem:[#allocation9 + $0x8] sm:$0xff]
    %v121 = vld [vmem:[#allocation9 + $0x10] sm:$0xff]
    %v122 = vld [vmem:[#allocation9 + $0x18] sm:$0xff]
    %v123 = vld [vmem:[#allocation9 + $0x20] sm:$0xff]
    %v124 = vld [vmem:[#allocation9 + $0x28] sm:$0xff]
    %v125 = vld [vmem:[#allocation9 + $0x30] sm:$0xff]
    %v126 = vld [vmem:[#allocation9 + $0x38] sm:$0xff]
    %v127 = vld [vmem:[#allocation9 + $0x40] sm:$0xff]
    %v128 = vld [vmem:[#allocation9 + $0x48] sm:$0xff]
    %v129 = vld [vmem:[#allocation9 + $0x50] sm:$0xff]
    %v130 = vld [vmem:[#allocation9 + $0x58] sm:$0xff]
    %v131 = vld [vmem:[#allocation9 + $0x60] sm:$0xff]
    %v132 = vld [vmem:[#allocation9 + $0x68] sm:$0xff]
    %v133 = vld [vmem:[#allocation9 + $0x70] sm:$0xff]
    %v134 = vld [vmem:[#allocation9 + $0x78] sm:$0xff]
    %v135 = vld [vmem:[#allocation11] sm:$0xff]
    %v136 = vld [vmem:[#allocation11 + $0x8] sm:$0xff]
    %v137 = vld [vmem:[#allocation11 + $0x10] sm:$0xff]
    %v138 = vld [vmem:[#allocation11 + $0x18] sm:$0xff]
    %v139 = vld [vmem:[#allocation11 + $0x20] sm:$0xff]
    %v140 = vld [vmem:[#allocation11 + $0x28] sm:$0xff]
    %v141 = vld [vmem:[#allocation11 + $0x30] sm:$0xff]
    %v142 = vld [vmem:[#allocation11 + $0x38] sm:$0xff]
    %v143 = vld [vmem:[#allocation11 + $0x40] sm:$0xff]
    %v144 = vld [vmem:[#allocation11 + $0x48] sm:$0xff]
    %v145 = vld [vmem:[#allocation11 + $0x50] sm:$0xff]
    %v146 = vld [vmem:[#allocation11 + $0x58] sm:$0xff]
    %v147 = vld [vmem:[#allocation11 + $0x60] sm:$0xff]
    %v148 = vld [vmem:[#allocation11 + $0x68] sm:$0xff]
    %v149 = vld [vmem:[#allocation11 + $0x70] sm:$0xff]
    %v150 = vld [vmem:[#allocation11 + $0x78] sm:$0xff]
    %151 = vmatprep.subr.mxu0 0.0
    %152 = vmatpush1.msra.mxu0 %v135
    %153 = vmatprep.subr.mxu0 0.0
    %154 = vmatpush1.msra.mxu0 %v136
    %155 = vmatprep.subr.mxu0 0.0
    %156 = vmatpush1.msra.mxu0 %v137
    %157 = vmatprep.subr.mxu0 0.0
    %158 = vmatpush1.msra.mxu0 %v138
    %159 = vmatprep.subr.mxu0 0.0
    %160 = vmatpush1.msra.mxu0 %v139
    %161 = vmatprep.subr.mxu0 0.0
    %162 = vmatpush1.msra.mxu0 %v140
    %163 = vmatprep.subr.mxu0 0.0
    %164 = vmatpush1.msra.mxu0 %v141
    %165 = vmatprep.subr.mxu0 0.0
    %166 = vmatpush1.msra.mxu0 %v142
    %167 = vmatprep.subr.mxu0 0.0
    %168 = vmatpush1.msra.mxu0 %v143
    %169 = vmatprep.subr.mxu0 0.0
    %170 = vmatpush1.msra.mxu0 %v144
    %171 = vmatprep.subr.mxu0 0.0
    %172 = vmatpush1.msra.mxu0 %v145
    %173 = vmatprep.subr.mxu0 0.0
    %174 = vmatpush1.msra.mxu0 %v146
    %175 = vmatprep.subr.mxu0 0.0
    %176 = vmatpush1.msra.mxu0 %v147
    %177 = vmatprep.subr.mxu0 0.0
    %178 = vmatpush1.msra.mxu0 %v148
    %179 = vmatprep.subr.mxu0 0.0
    %180 = vmatpush1.msra.mxu0 %v149
    %181 = vmatprep.subr.mxu0 0.0
    %182 = vmatpush1.msra.mxu0 %v150
    %183 = vmatprep.subr.mxu0 0.0
    %184 = vmatpush1.msra.mxu0 0.0
    %185 = vmatprep.subr.mxu0 0.0
    %186 = vmatpush1.msra.mxu0 0.0
    %187 = vmatprep.subr.mxu0 0.0
    %188 = vmatpush1.msra.mxu0 0.0
    %189 = vmatprep.subr.mxu0 0.0
    %190 = vmatpush1.msra.mxu0 0.0
    %191 = vmatprep.subr.mxu0 0.0
    %192 = vmatpush1.msra.mxu0 0.0
    %193 = vmatprep.subr.mxu0 0.0
    %194 = vmatpush1.msra.mxu0 0.0
    %195 = vmatprep.subr.mxu0 0.0
    %196 = vmatpush1.msra.mxu0 0.0
    %197 = vmatprep.subr.mxu0 0.0
    %198 = vmatpush1.msra.mxu0 0.0
    %199 = vmatprep.subr.mxu0 0.0
    %200 = vmatpush1.msra.mxu0 0.0
    %201 = vmatprep.subr.mxu0 0.0
    %202 = vmatpush1.msra.mxu0 0.0
    %203 = vmatprep.subr.mxu0 0.0
    %204 = vmatpush1.msra.mxu0 0.0
    %205 = vmatprep.subr.mxu0 0.0
    %206 = vmatpush1.msra.mxu0 0.0
    %207 = vmatprep.subr.mxu0 0.0
    %208 = vmatpush1.msra.mxu0 0.0
    %209 = vmatprep.subr.mxu0 0.0
    %210 = vmatpush1.msra.mxu0 0.0
    %211 = vmatprep.subr.mxu0 0.0
    %212 = vmatpush1.msra.mxu0 0.0
    %213 = vmatprep.subr.mxu0 0.0
    %214 = vmatpush1.msra.mxu0 0.0
    %215 = vmatprep.mubr.f32.mxu0 0.0
    %216 = vmatmul.mubr.f32.gmra.mrb[0].mxu0 %v111
    %v217 = vpop.f32.mrb[0].mxu0
    %v218 = vadd.f32 0.0, %v217
    %v219 = vpop.f32.mrb[0].mxu0
    %220 = vmatprep.mubr.f32.mxu0 0.0
    %221 = vmatmul.mubr.f32.gmra.mrb[0].mxu0 %v112
    %v222 = vpop.f32.mrb[0].mxu0
    %v223 = vadd.f32 0.0, %v222
    %v224 = vpop.f32.mrb[0].mxu0
    %225 = vmatprep.mubr.f32.mxu0 0.0
    %226 = vmatmul.mubr.f32.gmra.mrb[0].mxu0 %v113
    %v227 = vpop.f32.mrb[0].mxu0
    %v228 = vadd.f32 0.0, %v227
    %v229 = vpop.f32.mrb[0].mxu0
    %230 = vmatprep.mubr.f32.mxu0 0.0
    %231 = vmatmul.mubr.f32.gmra.mrb[0].mxu0 %v114
    %v232 = vpop.f32.mrb[0].mxu0
    %v233 = vadd.f32 0.0, %v232
    %v234 = vpop.f32.mrb[0].mxu0
    %235 = vmatprep.mubr.f32.mxu0 0.0
    %236 = vmatmul.mubr.f32.gmra.mrb[0].mxu0 %v115
    %v237 = vpop.f32.mrb[0].mxu0
    %v238 = vadd.f32 0.0, %v237
    %v239 = vpop.f32.mrb[0].mxu0
    %240 = vmatprep.mubr.f32.mxu0 0.0
    %241 = vmatmul.mubr.f32.gmra.mrb[0].mxu0 %v116
    %v242 = vpop.f32.mrb[0].mxu0
    %v243 = vadd.f32 0.0, %v242
    %v244 = vpop.f32.mrb[0].mxu0
    %245 = vmatprep.mubr.f32.mxu0 0.0
    %246 = vmatmul.mubr.f32.gmra.mrb[0].mxu0 %v117
    %v247 = vpop.f32.mrb[0].mxu0
    %v248 = vadd.f32 0.0, %v247
    %v249 = vpop.f32.mrb[0].mxu0
    %250 = vmatprep.mubr.f32.mxu0 0.0
    %251 = vmatmul.mubr.f32.gmra.mrb[0].mxu0 %v118
    %v252 = vpop.f32.mrb[0].mxu0
    %v253 = vadd.f32 0.0, %v252
    %v254 = vpop.f32.mrb[0].mxu0
    %255 = vdwg.mxu0
    %256 = vmatprep.subr.mxu0 0.0
    %257 = vmatpush1.msra.mxu0 %v119
    %258 = vmatprep.subr.mxu0 0.0
    %259 = vmatpush1.msra.mxu0 %v120
    %260 = vmatprep.subr.mxu0 0.0
    %261 = vmatpush1.msra.mxu0 %v121
    %262 = vmatprep.subr.mxu0 0.0
    %263 = vmatpush1.msra.mxu0 %v122
    %264 = vmatprep.subr.mxu0 0.0
    %265 = vmatpush1.msra.mxu0 %v123
    %266 = vmatprep.subr.mxu0 0.0
    %267 = vmatpush1.msra.mxu0 %v124
    %268 = vmatprep.subr.mxu0 0.0
    %269 = vmatpush1.msra.mxu0 %v125
    %270 = vmatprep.subr.mxu0 0.0
    %271 = vmatpush1.msra.mxu0 %v126
    %272 = vmatprep.subr.mxu0 0.0
    %273 = vmatpush1.msra.mxu0 %v127
    %274 = vmatprep.subr.mxu0 0.0
    %275 = vmatpush1.msra.mxu0 %v128
    %276 = vmatprep.subr.mxu0 0.0
    %277 = vmatpush1.msra.mxu0 %v129
    %278 = vmatprep.subr.mxu0 0.0
    %279 = vmatpush1.msra.mxu0 %v130
    %280 = vmatprep.subr.mxu0 0.0
    %281 = vmatpush1.msra.mxu0 %v131
    %282 = vmatprep.subr.mxu0 0.0
    %283 = vmatpush1.msra.mxu0 %v132
    %284 = vmatprep.subr.mxu0 0.0
    %285 = vmatpush1.msra.mxu0 %v133
    %286 = vmatprep.subr.mxu0 0.0
    %287 = vmatpush1.msra.mxu0 %v134
    %288 = vmatprep.subr.mxu0 0.0
    %289 = vmatpush1.msra.mxu0 0.0
    %290 = vmatprep.subr.mxu0 0.0
    %291 = vmatpush1.msra.mxu0 0.0
    %292 = vmatprep.subr.mxu0 0.0
    %293 = vmatpush1.msra.mxu0 0.0
    %294 = vmatprep.subr.mxu0 0.0
    %295 = vmatpush1.msra.mxu0 0.0
    %296 = vmatprep.subr.mxu0 0.0
    %297 = vmatpush1.msra.mxu0 0.0
    %298 = vmatprep.subr.mxu0 0.0
    %299 = vmatpush1.msra.mxu0 0.0
    %300 = vmatprep.subr.mxu0 0.0
    %301 = vmatpush1.msra.mxu0 0.0
    %302 = vmatprep.subr.mxu0 0.0
    %303 = vmatpush1.msra.mxu0 0.0
    %304 = vmatprep.subr.mxu0 0.0
    %305 = vmatpush1.msra.mxu0 0.0
    %306 = vmatprep.subr.mxu0 0.0
    %307 = vmatpush1.msra.mxu0 0.0
    %308 = vmatprep.subr.mxu0 0.0
    %309 = vmatpush1.msra.mxu0 0.0
    %310 = vmatprep.subr.mxu0 0.0
    %311 = vmatpush1.msra.mxu0 0.0
    %312 = vmatprep.subr.mxu0 0.0
    %313 = vmatpush1.msra.mxu0 0.0
    %314 = vmatprep.subr.mxu0 0.0
    %315 = vmatpush1.msra.mxu0 0.0
    %316 = vmatprep.subr.mxu0 0.0
    %317 = vmatpush1.msra.mxu0 0.0
    %318 = vmatprep.subr.mxu0 0.0
    %319 = vmatpush1.msra.mxu0 0.0
    %320 = vmatprep.mubr.f32.mxu0 0.0
    %321 = vmatmul.mubr.f32.gmra.mrb[0].mxu0 %v103
    %v322 = vpop.f32.mrb[0].mxu0
    %v323 = vadd.f32 %v218, %v322
    %v324 = vpop.f32.mrb[0].mxu0
    %325 = vmatprep.mubr.f32.mxu0 0.0
    %326 = vmatmul.mubr.f32.gmra.mrb[0].mxu0 %v104
    %v327 = vpop.f32.mrb[0].mxu0
    %v328 = vadd.f32 %v223, %v327
    %v329 = vpop.f32.mrb[0].mxu0
    %330 = vmatprep.mubr.f32.mxu0 0.0
    %331 = vmatmul.mubr.f32.gmra.mrb[0].mxu0 %v105
    %v332 = vpop.f32.mrb[0].mxu0
    %v333 = vadd.f32 %v228, %v332
    %v334 = vpop.f32.mrb[0].mxu0
    %335 = vmatprep.mubr.f32.mxu0 0.0
    %336 = vmatmul.mubr.f32.gmra.mrb[0].mxu0 %v106
    %v337 = vpop.f32.mrb[0].mxu0
    %v338 = vadd.f32 %v233, %v337
    %v339 = vpop.f32.mrb[0].mxu0
    %340 = vmatprep.mubr.f32.mxu0 0.0
    %341 = vmatmul.mubr.f32.gmra.mrb[0].mxu0 %v107
    %v342 = vpop.f32.mrb[0].mxu0
    %v343 = vadd.f32 %v238, %v342
    %v344 = vpop.f32.mrb[0].mxu0
    %345 = vmatprep.mubr.f32.mxu0 0.0
    %346 = vmatmul.mubr.f32.gmra.mrb[0].mxu0 %v108
    %v347 = vpop.f32.mrb[0].mxu0
    %v348 = vadd.f32 %v243, %v347
    %v349 = vpop.f32.mrb[0].mxu0
    %350 = vmatprep.mubr.f32.mxu0 0.0
    %351 = vmatmul.mubr.f32.gmra.mrb[0].mxu0 %v109
    %v352 = vpop.f32.mrb[0].mxu0
    %v353 = vadd.f32 %v248, %v352
    %v354 = vpop.f32.mrb[0].mxu0
    %355 = vmatprep.mubr.f32.mxu0 0.0
    %356 = vmatmul.mubr.f32.gmra.mrb[0].mxu0 %v110
    %v357 = vpop.f32.mrb[0].mxu0
    %v358 = vadd.f32 %v253, %v357
    %v359 = vpop.f32.mrb[0].mxu0
    %360 = vdwg.mxu0
    %v361 = vld [vmem:[%s5] sm:$0x1]
    %v363 = vlaneseq
    %v364 = vshrl.u32 %v363, 7
    %v365 = vsub.s32 0, %v364
    %v366 = vrot.slane %v361, %v365
    %v368 = vadd.f32 %v323, %v366
    %v369 = vadd.f32 %v328, %v366
    %v370 = vadd.f32 %v333, %v366
    %v371 = vadd.f32 %v338, %v366
    %v372 = vadd.f32 %v343, %v366
    %v373 = vadd.f32 %v348, %v366
    %v374 = vadd.f32 %v353, %v366
    %v375 = vadd.f32 %v358, %v366
    %v376 = vtanh.pop %v368
    %v377 = vtanh.pop %v369
    %v378 = vtanh.pop %v370
    %v379 = vtanh.pop %v371
    %v380 = vtanh.pop %v372
    %v381 = vtanh.pop %v373
    %v382 = vtanh.pop %v374
    %v383 = vtanh.pop %v375
    %v384 = vld [vmem:[%s6] sm:$0x1]
    %v386 = vlaneseq
    %v387 = vshrl.u32 %v386, 7
    %v388 = vsub.s32 0, %v387
    %v389 = vrot.slane %v384, %v388
    %v391 = vmul.f32 %v376, %v389
    %v392 = vmul.f32 %v377, %v389
    %v393 = vmul.f32 %v378, %v389
    %v394 = vmul.f32 %v379, %v389
    %v395 = vmul.f32 %v380, %v389
    %v396 = vmul.f32 %v381, %v389
    %v397 = vmul.f32 %v382, %v389
    %v398 = vmul.f32 %v383, %v389
    %399 = vadd.xlane.f32.xlu0 %v391
    %v400 = vpop.xlane.xlu0 %399
    %401 = vadd.xlane.f32.xlu0 %v392
    %v402 = vpop.xlane.xlu0 %401
    %403 = vadd.xlane.f32.xlu0 %v393
    %v404 = vpop.xlane.xlu0 %403
    %405 = vadd.xlane.f32.xlu0 %v394
    %v406 = vpop.xlane.xlu0 %405
    %407 = vadd.xlane.f32.xlu0 %v395
    %v408 = vpop.xlane.xlu0 %407
    %409 = vadd.xlane.f32.xlu0 %v396
    %v410 = vpop.xlane.xlu0 %409
    %411 = vadd.xlane.f32.xlu0 %v397
    %v412 = vpop.xlane.xlu0 %411
    %413 = vadd.xlane.f32.xlu0 %v398
    %v414 = vpop.xlane.xlu0 %413
    %v415 = vld [vmem:[#allocation2] sm:$0x1]
    %v417 = vlaneseq
    %v418 = vshrl.u32 %v417, 7
    %v419 = vsub.s32 0, %v418
    %v420 = vrot.slane %v415, %v419
    %421 = vset.pattern.permute.xlu0 0
    %422 = vperm.xlu0 %421, %v420
    %v423 = vpop.permute.xlu0 %422
    %v425 = vadd.f32 %v400, %v423
    %v426 = vadd.f32 %v402, %v423
    %v427 = vadd.f32 %v404, %v423
    %v428 = vadd.f32 %v406, %v423
    %v429 = vadd.f32 %v408, %v423
    %v430 = vadd.f32 %v410, %v423
    %v431 = vadd.f32 %v412, %v423
    %v432 = vadd.f32 %v414, %v423
    %v441 = vlaneseq
    %v442 = vand.u32 %v441, 127
    %v443 = vlaneseq
    %v444 = vshrl.u32 %v443, 7
    %v445 = vsub.s32 %v442, %v444
    %v446 = vrot.slane %v425, %v445
    %v447 = vadd.s32 %v442, 4294967288
    %v448 = vlaneseq
    %v449 = vshrl.u32 %v448, 7
    %v450 = vsub.s32 %v447, %v449
    %v451 = vrot.slane %v426, %v450
    %vm452 = vcmask 130112
    %v453 = vsel %vm452, %v451, %v446
    %v454 = vlaneseq
    %v455 = vshrl.u32 %v454, 7
    %v456 = vsub.s32 %v442, %v455
    %v457 = vrot.slane %v427, %v456
    %v458 = vlaneseq
    %v459 = vshrl.u32 %v458, 7
    %v460 = vsub.s32 %v447, %v459
    %v461 = vrot.slane %v428, %v460
    %v462 = vsel %vm452, %v461, %v457
    %v463 = vlaneseq
    %v464 = vshrl.u32 %v463, 7
    %v465 = vsub.s32 %v442, %v464
    %v466 = vrot.slane %v429, %v465
    %v467 = vlaneseq
    %v468 = vshrl.u32 %v467, 7
    %v469 = vsub.s32 %v447, %v468
    %v470 = vrot.slane %v430, %v469
    %v471 = vsel %vm452, %v470, %v466
    %v472 = vlaneseq
    %v473 = vshrl.u32 %v472, 7
    %v474 = vsub.s32 %v442, %v473
    %v475 = vrot.slane %v431, %v474
    %v476 = vlaneseq
    %v477 = vshrl.u32 %v476, 7
    %v478 = vsub.s32 %v447, %v477
    %v479 = vrot.slane %v432, %v478
    %v480 = vsel %vm452, %v479, %v475
    %vm481 = vcmask 1041409
    %v482 = vsel %vm481, %v462, %v453
    %vm483 = vcmask 1042434
    %v484 = vsel %vm483, %v471, %v482
    %vm485 = vcmask 1043459
    %v486 = vsel %vm485, %v480, %v484
    %vm488 = vcmask 125952
    %v489 = vsel %vm488, %v486, -inf
    %490 = vmax.xlane.f32.xlu0 %v489
    %v491 = vpop.xlane.xlu0 %490
    %v493 = vlaneseq
    %v494 = vshrl.u32 %v493, 7
    %v495 = vsub.s32 0, %v494
    %v496 = vrot.slane %v491, %v495
    %v497 = vlaneseq
    %v498 = vshrl.u32 %v497, 7
    %v499 = vsub.s32 1, %v498
    %v500 = vrot.slane %v491, %v499
    %v501 = vlaneseq
    %v502 = vshrl.u32 %v501, 7
    %v503 = vsub.s32 2, %v502
    %v504 = vrot.slane %v491, %v503
    %v505 = vlaneseq
    %v506 = vshrl.u32 %v505, 7
    %v507 = vsub.s32 3, %v506
    %v508 = vrot.slane %v491, %v507
    %v513 = vsub.f32 %v425, %v496
    %v514 = vsub.f32 %v426, %v496
    %v515 = vsub.f32 %v427, %v500
    %v516 = vsub.f32 %v428, %v500
    %v517 = vsub.f32 %v429, %v504
    %v518 = vsub.f32 %v430, %v504
    %v519 = vsub.f32 %v431, %v508
    %v520 = vsub.f32 %v432, %v508
    %v521 = vmul.f32 %v513, 1.442695
    %v522 = vpow.pop %v521
    %v523 = vmul.f32 %v514, 1.442695
    %v524 = vpow.pop %v523
    %v525 = vmul.f32 %v515, 1.442695
    %v526 = vpow.pop %v525
    %v527 = vmul.f32 %v516, 1.442695
    %v528 = vpow.pop %v527
    %v529 = vmul.f32 %v517, 1.442695
    %v530 = vpow.pop %v529
    %v531 = vmul.f32 %v518, 1.442695
    %v532 = vpow.pop %v531
    %v533 = vmul.f32 %v519, 1.442695
    %v534 = vpow.pop %v533
    %v535 = vmul.f32 %v520, 1.442695
    %v536 = vpow.pop %v535
    %545 = vset.pattern.permute.xlu0 0
    %546 = vperm.xlu0 %545, %v522
    %v547 = vpop.permute.xlu0 %546
    %548 = vset.pattern.permute.xlu0 0
    %549 = vperm.xlu0 %548, %v524
    %v550 = vpop.permute.xlu0 %549
    %551 = vset.pattern.permute.xlu0 0
    %552 = vperm.xlu0 %551, %v526
    %v553 = vpop.permute.xlu0 %552
    %554 = vset.pattern.permute.xlu0 0
    %555 = vperm.xlu0 %554, %v528
    %v556 = vpop.permute.xlu0 %555
    %557 = vset.pattern.permute.xlu0 0
    %558 = vperm.xlu0 %557, %v530
    %v559 = vpop.permute.xlu0 %558
    %560 = vset.pattern.permute.xlu0 0
    %561 = vperm.xlu0 %560, %v532
    %v562 = vpop.permute.xlu0 %561
    %563 = vset.pattern.permute.xlu0 0
    %564 = vperm.xlu0 %563, %v534
    %v565 = vpop.permute.xlu0 %564
    %566 = vset.pattern.permute.xlu0 0
    %567 = vperm.xlu0 %566, %v536
    %v568 = vpop.permute.xlu0 %567
    %v569 = vlaneseq
    %v570 = vshrl.u32 %v569, 7
    %v571 = vsub.s32 %v442, %v570
    %v572 = vrot.slane %v547, %v571
    %v573 = vlaneseq
    %v574 = vshrl.u32 %v573, 7
    %v575 = vsub.s32 %v447, %v574
    %v576 = vrot.slane %v550, %v575
    %v577 = vsel %vm452, %v576, %v572
    %v578 = vlaneseq
    %v579 = vshrl.u32 %v578, 7
    %v580 = vsub.s32 %v442, %v579
    %v581 = vrot.slane %v553, %v580
    %v582 = vlaneseq
    %v583 = vshrl.u32 %v582, 7
    %v584 = vsub.s32 %v447, %v583
    %v585 = vrot.slane %v556, %v584
    %v586 = vsel %vm452, %v585, %v581
    %v587 = vlaneseq
    %v588 = vshrl.u32 %v587, 7
    %v589 = vsub.s32 %v442, %v588
    %v590 = vrot.slane %v559, %v589
    %v591 = vlaneseq
    %v592 = vshrl.u32 %v591, 7
    %v593 = vsub.s32 %v447, %v592
    %v594 = vrot.slane %v562, %v593
    %v595 = vsel %vm452, %v594, %v590
    %v596 = vlaneseq
    %v597 = vshrl.u32 %v596, 7
    %v598 = vsub.s32 %v442, %v597
    %v599 = vrot.slane %v565, %v598
    %v600 = vlaneseq
    %v601 = vshrl.u32 %v600, 7
    %v602 = vsub.s32 %v447, %v601
    %v603 = vrot.slane %v568, %v602
    %v604 = vsel %vm452, %v603, %v599
    %v605 = vsel %vm481, %v586, %v577
    %v606 = vsel %vm483, %v595, %v605
    %v607 = vsel %vm485, %v604, %v606
    %v609 = vsel %vm488, %v607, 0.0
    %610 = vadd.xlane.f32.xlu0 %v609
    %v611 = vpop.xlane.xlu0 %610
    %v613 = vlaneseq
    %v614 = vshrl.u32 %v613, 7
    %v615 = vsub.s32 0, %v614
    %v616 = vrot.slane %v611, %v615
    %v617 = vlaneseq
    %v618 = vshrl.u32 %v617, 7
    %v619 = vsub.s32 1, %v618
    %v620 = vrot.slane %v611, %v619
    %v621 = vlaneseq
    %v622 = vshrl.u32 %v621, 7
    %v623 = vsub.s32 2, %v622
    %v624 = vrot.slane %v611, %v623
    %v625 = vlaneseq
    %v626 = vshrl.u32 %v625, 7
    %v627 = vsub.s32 3, %v626
    %v628 = vrot.slane %v611, %v627
    %v633 = vrcp.pop %v616
    %v634 = vmul.f32 %v522, %v633
    %v635 = vmul.f32 %v524, %v633
    %v636 = vrcp.pop %v620
    %v637 = vmul.f32 %v526, %v636
    %v638 = vmul.f32 %v528, %v636
    %v639 = vrcp.pop %v624
    %v640 = vmul.f32 %v530, %v639
    %v641 = vmul.f32 %v532, %v639
    %v642 = vrcp.pop %v628
    %v643 = vmul.f32 %v534, %v642
    %v644 = vmul.f32 %v536, %v642
    %v645 = vld [vmem:[#allocation8] sm:$0xff]
    %v646 = vld [vmem:[#allocation8 + $0x8] sm:$0xff]
    %v647 = vld [vmem:[#allocation8 + $0x10] sm:$0xff]
    %v648 = vld [vmem:[#allocation8 + $0x18] sm:$0xff]
    %v649 = vld [vmem:[#allocation8 + $0x20] sm:$0xff]
    %v650 = vld [vmem:[#allocation8 + $0x28] sm:$0xff]
    %v651 = vld [vmem:[#allocation8 + $0x30] sm:$0xff]
    %v652 = vld [vmem:[#allocation8 + $0x38] sm:$0xff]
    %654 = vset.pattern.permute.xlu0 0
    %655 = vperm.xlu0 %654, %v634
    %v656 = vpop.permute.xlu0 %655
    %659 = vset.pattern.permute.xlu0 0
    %660 = vperm.xlu0 %659, %v635
    %v661 = vpop.permute.xlu0 %660
    %664 = vset.pattern.permute.xlu0 0
    %665 = vperm.xlu0 %664, %v637
    %v666 = vpop.permute.xlu0 %665
    %669 = vset.pattern.permute.xlu0 0
    %670 = vperm.xlu0 %669, %v638
    %v671 = vpop.permute.xlu0 %670
    %674 = vset.pattern.permute.xlu0 0
    %675 = vperm.xlu0 %674, %v640
    %v676 = vpop.permute.xlu0 %675
    %679 = vset.pattern.permute.xlu0 0
    %680 = vperm.xlu0 %679, %v641
    %v681 = vpop.permute.xlu0 %680
    %684 = vset.pattern.permute.xlu0 0
    %685 = vperm.xlu0 %684, %v643
    %v686 = vpop.permute.xlu0 %685
    %689 = vset.pattern.permute.xlu0 0
    %690 = vperm.xlu0 %689, %v644
    %v691 = vpop.permute.xlu0 %690
    %v693 = vmul.f32 %v656, %v645
    %v694 = vmul.f32 %v661, %v646
    %v695 = vmul.f32 %v666, %v647
    %v696 = vmul.f32 %v671, %v648
    %v697 = vmul.f32 %v676, %v649
    %v698 = vmul.f32 %v681, %v650
    %v699 = vmul.f32 %v686, %v651
    %v700 = vmul.f32 %v691, %v652
    %v701 = vadd.f32 %v693, %v694
    %v702 = vrot.slane %v701, 4
    %v703 = vadd.f32 %v701, %v702
    %v704 = vrot.slane %v703, 2
    %v705 = vadd.f32 %v703, %v704
    %v706 = vrot.slane %v705, 1
    %v707 = vadd.f32 %v705, %v706
    %v708 = vadd.f32 %v695, %v696
    %v709 = vrot.slane %v708, 4
    %v710 = vadd.f32 %v708, %v709
    %v711 = vrot.slane %v710, 2
    %v712 = vadd.f32 %v710, %v711
    %v713 = vrot.slane %v712, 1
    %v714 = vadd.f32 %v712, %v713
    %v715 = vadd.f32 %v697, %v698
    %v716 = vrot.slane %v715, 4
    %v717 = vadd.f32 %v715, %v716
    %v718 = vrot.slane %v717, 2
    %v719 = vadd.f32 %v717, %v718
    %v720 = vrot.slane %v719, 1
    %v721 = vadd.f32 %v719, %v720
    %v722 = vadd.f32 %v699, %v700
    %v723 = vrot.slane %v722, 4
    %v724 = vadd.f32 %v722, %v723
    %v725 = vrot.slane %v724, 2
    %v726 = vadd.f32 %v724, %v725
    %v727 = vrot.slane %v726, 1
    %v728 = vadd.f32 %v726, %v727
    %v733 = vsel %vm481, %v714, %v707
    %v734 = vsel %vm483, %v721, %v733
    %v735 = vsel %vm485, %v728, %v734
    %737 = vst [vmem:[#allocation12] sm:$0xf] %v735
    %v738 = vlaneseq
    %v739 = vshrl.u32 %v738, 7
    %v740 = vsub.s32 %v442, %v739
    %v741 = vrot.slane %v656, %v740
    %v742 = vlaneseq
    %v743 = vshrl.u32 %v742, 7
    %v744 = vsub.s32 %v447, %v743
    %v745 = vrot.slane %v661, %v744
    %v746 = vsel %vm452, %v745, %v741
    %v747 = vlaneseq
    %v748 = vshrl.u32 %v747, 7
    %v749 = vsub.s32 %v442, %v748
    %v750 = vrot.slane %v666, %v749
    %v751 = vlaneseq
    %v752 = vshrl.u32 %v751, 7
    %v753 = vsub.s32 %v447, %v752
    %v754 = vrot.slane %v671, %v753
    %v755 = vsel %vm452, %v754, %v750
    %v756 = vlaneseq
    %v757 = vshrl.u32 %v756, 7
    %v758 = vsub.s32 %v442, %v757
    %v759 = vrot.slane %v676, %v758
    %v760 = vlaneseq
    %v761 = vshrl.u32 %v760, 7
    %v762 = vsub.s32 %v447, %v761
    %v763 = vrot.slane %v681, %v762
    %v764 = vsel %vm452, %v763, %v759
    %v765 = vlaneseq
    %v766 = vshrl.u32 %v765, 7
    %v767 = vsub.s32 %v442, %v766
    %v768 = vrot.slane %v686, %v767
    %v769 = vlaneseq
    %v770 = vshrl.u32 %v769, 7
    %v771 = vsub.s32 %v447, %v770
    %v772 = vrot.slane %v691, %v771
    %v773 = vsel %vm452, %v772, %v768
    %v774 = vsel %vm481, %v755, %v746
    %v775 = vsel %vm483, %v764, %v774
    %v776 = vsel %vm485, %v773, %v775
    %778 = vst.msk [vmem:[#allocation13] sm:$0xf] %vm488, %v776
    // Predicated region
    $region54: #{tpu_custom_call.1} parent=1 // pred_check
      _
    $region55: #{tpu_custom_call.1} parent=1 // pred_check_branch
      %780 = sbr.rel (0) target = $region57
    $region56: #{tpu_custom_call.1} parent=1 // pred_region
      %s782 = ssub.s32 64, 64
      %783 = vsyncadd [#allocation5], %s782
      %s785 = sshll.u32 [#allocation12], 4
      %s786 = int_to_ptr.vmem [resolvable:$true] %s785
      %788 = dma.vmem_to_hbm [thread:$0]  %s786, 64, %s8, [#allocation5]
    $region57: #{tpu_custom_call.1} parent=1 // pred_fallthru
      _
    // Predicated region
    $region58: #{tpu_custom_call.1} parent=1 // pred_check
      _
    $region59: #{tpu_custom_call.1} parent=1 // pred_check_branch
      %790 = sbr.rel (0) target = $region61
    $region60: #{tpu_custom_call.1} parent=1 // pred_region
      %s792 = ssub.s32 64, 64
      %793 = vsyncadd [#allocation14], %s792
      %s795 = sshll.u32 [#allocation13], 4
      %s796 = int_to_ptr.vmem [resolvable:$true] %s795
      %798 = dma.vmem_to_hbm [thread:$0]  %s796, 64, %s9, [#allocation14]
    $region61: #{tpu_custom_call.1} parent=1 // pred_fallthru
      _
    // Predicated region
    $region62: #{tpu_custom_call.1} parent=1 // pred_check
      _
    $region63: #{tpu_custom_call.1} parent=1 // pred_check_branch
      %800 = sbr.rel (0) target = $region65
    $region64: #{tpu_custom_call.1} parent=1 // pred_region
      %801 = dma.done [#allocation5], 64
    $region65: #{tpu_custom_call.1} parent=1 // pred_fallthru
      _
    // Predicated region
    $region66: #{tpu_custom_call.1} parent=1 // pred_check
      _
    $region67: #{tpu_custom_call.1} parent=1 // pred_check_branch
      %803 = sbr.rel (0) target = $region69
    $region68: #{tpu_custom_call.1} parent=1 // pred_region
      %804 = dma.done [#allocation14], 64
    $region69: #{tpu_custom_call.1} parent=1 // pred_fallthru
      _
    %805 = vsyncpa [#allocation4], 1
    %806 = vsyncpa [#allocation7], 1
    %807 = vsyncpa [#allocation10], 1
    %808 = vsyncpa [#allocation5], 1
    %809 = vsyncpa [#allocation14], 1

</llo_original>
